<compile_context>
chip_gen: v6e
topology: v6e:2x2x1
jax: 0.10.0
libtpu: 0.0.40
codegen_flags: <defaults>
</compile_context>

<pallas_src>
from functools import partial

import jax
import jax.numpy as jnp
from jax.experimental import pallas as pl
from jax.experimental.pallas import tpu as pltpu


_LANE = 128


def _round_up(x, m):
    return (x + m - 1) // m * m


def _keypoint_loss_kernel(inv_n, pred_ref, gt_ref, mask_ref, area_ref,
                          isig_ref, out_ref):
    """One batch-tile of the KeypointLoss forward.

    pred_ref / gt_ref : (2, K, TN)  x/y planes, N on the lane axis
    mask_ref          : (K, TN)
    area_ref          : (1, TN)
    isig_ref          : (K, 1)      == 1 / (8 * sigma^2)   (hoisted)
    out_ref           : (1, 128)    lane-dense per-tile partial sum
    """
    px = pred_ref[0]                     # (K, TN)
    py = pred_ref[1]
    gx = gt_ref[0]
    gy = gt_ref[1]
    mask = mask_ref[...]                 # (K, TN)
    area = area_ref[...]                 # (1, TN)
    isig = isig_ref[...]                 # (K, 1)

    dx = px - gx
    dy = py - gy
    d = dx * dx + dy * dy                # (K, TN) squared Euclidean distance

    # Per-instance valid-keypoint count: sublane-axis reduce.
    # NOTE: assumes kpt_mask entries are 0/1 (as in Ultralytics), which makes
    # sum(mask) identical to sum(mask != 0) without a compare+cast per element.
    cnt = jnp.sum(mask, axis=0, keepdims=True)          # (1, TN)

    # kpt_loss_factor fused with the global mean divisor:
    #   (K / (cnt + eps)) / (N * K) == (1 / N) / (cnt + eps)
    klf = inv_n / (cnt + 1e-9)                          # (1, TN)

    # e = d / ((2*sigma)^2 * (area + eps) * 2) = d * isig * 1/(area + eps)
    inv_area = pl.reciprocal(area + 1e-9, approx=True)  # EUP slot, ~free
    e = d * isig * inv_area                             # (K, TN)

    terms = (1.0 - jnp.exp(-e)) * mask * klf            # (K, TN)
    tile_sum = jnp.sum(terms)

    # Lane-dense output block: broadcast the scalar across all 128 lanes so
    # the store is a full, unmasked vst. The wrapper picks lane 0 per tile.
    out_ref[...] = jnp.broadcast_to(tile_sum, out_ref.shape).astype(jnp.float32)


def keypoint_loss(pred_kpts, gt_kpts, kpt_mask, area, sigmas, *, tile_n=1024):
    """Pallas-backed equivalent of KeypointLoss.forward (returns a scalar)."""
    N, K = kpt_mask.shape

    # Lane-dense layout: N on lanes, K on sublanes. One transpose per array
    # (if the producer can emit this layout directly, these transposes vanish).
    pred_t = jnp.transpose(pred_kpts.astype(jnp.float32), (2, 1, 0))   # (2, K, N)
    gt_t = jnp.transpose(gt_kpts.astype(jnp.float32), (2, 1, 0))       # (2, K, N)
    mask_t = jnp.transpose(kpt_mask.astype(jnp.float32), (1, 0))       # (K, N)
    area_r = jnp.reshape(area.astype(jnp.float32), (1, N))             # (1, N)

    # Hoisted: 1 / ((2*sigma)^2 * 2) == 1 / (8 * sigma^2), shape (K, 1).
    sig = jnp.reshape(sigmas.astype(jnp.float32), (K, 1))
    inv_sig = 1.0 / (8.0 * sig * sig)

    # Pick a lane-axis tile size (multiple of 128) and pad N so it divides.
    tn = _round_up(min(tile_n, _round_up(N, _LANE)), _LANE)
    n_pad = _round_up(N, tn)
    if n_pad != N:
        p = n_pad - N
        # Zero padding contributes exactly 0 to the sum (mask == 0, d == 0).
        pred_t = jnp.pad(pred_t, ((0, 0), (0, 0), (0, p)))
        gt_t = jnp.pad(gt_t, ((0, 0), (0, 0), (0, p)))
        mask_t = jnp.pad(mask_t, ((0, 0), (0, p)))
        area_r = jnp.pad(area_r, ((0, 0), (0, p)))
    num_tiles = n_pad // tn

    partials = pl.pallas_call(
        partial(_keypoint_loss_kernel, float(1.0 / N)),
        out_shape=jax.ShapeDtypeStruct((1, num_tiles * _LANE), jnp.float32),
        grid=(num_tiles,),
        in_specs=[
            pl.BlockSpec((2, K, tn), lambda i: (0, 0, i)),   # pred x/y planes
            pl.BlockSpec((2, K, tn), lambda i: (0, 0, i)),   # gt   x/y planes
            pl.BlockSpec((K, tn), lambda i: (0, i)),         # mask
            pl.BlockSpec((1, tn), lambda i: (0, i)),         # area
            pl.BlockSpec((K, 1), lambda i: (0, 0)),          # 1/(8*sigma^2)
        ],
        out_specs=pl.BlockSpec((1, _LANE), lambda i: (0, i)),
        compiler_params=pltpu.CompilerParams(
            dimension_semantics=("parallel",)),              # 2-TC on v7x
    )(pred_t, gt_t, mask_t, area_r, inv_sig)

    # All 128 lanes of a tile's block hold the same partial sum; take lane 0.
    return jnp.sum(partials.reshape(num_tiles, _LANE)[:, 0])


def keypoint_loss_ref(pred_kpts, gt_kpts, kpt_mask, area, sigmas):
    """Pure-JAX reference mirroring the PyTorch module."""
    d = (pred_kpts[..., 0] - gt_kpts[..., 0]) ** 2 + \
        (pred_kpts[..., 1] - gt_kpts[..., 1]) ** 2
    klf = kpt_mask.shape[1] / (jnp.sum(kpt_mask != 0, axis=1) + 1e-9)
    e = d / ((2 * sigmas) ** 2 * (area + 1e-9) * 2)
    return jnp.mean(klf.reshape(-1, 1) * ((1 - jnp.exp(-e)) * kpt_mask))


def _make_inputs(key, n, k):
    k1, k2, k3, k4 = jax.random.split(key, 4)
    pred_kpts = jax.random.normal(k1, (n, k, 2), dtype=jnp.float32) * 10.0
    gt_kpts = jax.random.normal(k2, (n, k, 2), dtype=jnp.float32) * 10.0
    kpt_mask = (jax.random.uniform(k3, (n, k)) > 0.3).astype(jnp.float32)
    area = jax.random.uniform(k4, (n, 1), dtype=jnp.float32) * 100.0 + 1.0
    sigmas = jnp.linspace(0.025, 0.107, k, dtype=jnp.float32)
    return pred_kpts, gt_kpts, kpt_mask, area, sigmas


if __name__ == "__main__":
    key = jax.random.PRNGKey(0)
    k_a, k_b = jax.random.split(key)

    # Case 1: small toy shape (single tile, padded 8 -> 128 lanes).
    pred, gt, mask, area, sigmas = _make_inputs(k_a, 8, 16)
    loss = jax.block_until_ready(keypoint_loss(pred, gt, mask, area, sigmas))
    ref = keypoint_loss_ref(pred, gt, mask, area, sigmas)
    # approx reciprocal for 1/(area+eps) -> allow ~1e-3-level relative slack.
    assert jnp.allclose(loss, ref, rtol=5e-3, atol=1e-7), (loss, ref)

    # Case 2: COCO-like K=17, multi-tile batch with padding (300 -> 3 x 128).
    pred2, gt2, mask2, area2, sigmas2 = _make_inputs(k_b, 300, 17)
    loss2 = jax.block_until_ready(
        keypoint_loss(pred2, gt2, mask2, area2, sigmas2, tile_n=128))
    ref2 = keypoint_loss_ref(pred2, gt2, mask2, area2, sigmas2)
    assert jnp.allclose(loss2, ref2, rtol=5e-3, atol=1e-7), (loss2, ref2)

    print("KERNEL_OK")
</pallas_src>

<mosaic_0001>
module attributes {stable_mosaic.version = 11 : i64} {
  func.func @_keypoint_loss_kernel(%arg0: i32, %arg1: memref<2x16x128xf32, #tpu.memory_space<vmem>>, %arg2: memref<2x16x128xf32, #tpu.memory_space<vmem>>, %arg3: memref<16x128xf32, #tpu.memory_space<vmem>>, %arg4: memref<1x128xf32, #tpu.memory_space<vmem>>, %arg5: memref<16x1xf32, #tpu.memory_space<vmem>>, %arg6: memref<1x128xf32, #tpu.memory_space<vmem>>) attributes {dimension_semantics = [#tpu.dimension_semantics<parallel>], iteration_bounds = array<i64: 1>, scalar_prefetch = 0 : i64, scratch_operands = 0 : i64, tpu.core_type = #tpu.core_type<tc>, window_params = [{transform_indices = @transform_0, window_bounds = array<i64: 2, 16, 128>}, {transform_indices = @transform_1, window_bounds = array<i64: 2, 16, 128>}, {transform_indices = @transform_2, window_bounds = array<i64: 16, 128>}, {transform_indices = @transform_3, window_bounds = array<i64: 1, 128>}, {pipeline_mode = #tpu.pipeline_mode<synchronous>, transform_indices = @transform_4, window_bounds = array<i64: 16, 1>}, {transform_indices = @transform_5, window_bounds = array<i64: 1, 128>}]} {
    %c0 = arith.constant 0 : index
    %c0_0 = arith.constant 0 : index
    %c0_1 = arith.constant 0 : index
    %0 = vector.load %arg1[%c0, %c0_0, %c0_1] : memref<2x16x128xf32, #tpu.memory_space<vmem>>, vector<1x16x128xf32>
    %1 = vector.shape_cast %0 : vector<1x16x128xf32> to vector<16x128xf32>
    %c1 = arith.constant 1 : index
    %c0_2 = arith.constant 0 : index
    %c0_3 = arith.constant 0 : index
    %2 = vector.load %arg1[%c1, %c0_2, %c0_3] : memref<2x16x128xf32, #tpu.memory_space<vmem>>, vector<1x16x128xf32>
    %3 = vector.shape_cast %2 : vector<1x16x128xf32> to vector<16x128xf32>
    %c0_4 = arith.constant 0 : index
    %c0_5 = arith.constant 0 : index
    %c0_6 = arith.constant 0 : index
    %4 = vector.load %arg2[%c0_4, %c0_5, %c0_6] : memref<2x16x128xf32, #tpu.memory_space<vmem>>, vector<1x16x128xf32>
    %5 = vector.shape_cast %4 : vector<1x16x128xf32> to vector<16x128xf32>
    %c1_7 = arith.constant 1 : index
    %c0_8 = arith.constant 0 : index
    %c0_9 = arith.constant 0 : index
    %6 = vector.load %arg2[%c1_7, %c0_8, %c0_9] : memref<2x16x128xf32, #tpu.memory_space<vmem>>, vector<1x16x128xf32>
    %7 = vector.shape_cast %6 : vector<1x16x128xf32> to vector<16x128xf32>
    %c0_10 = arith.constant 0 : index
    %c0_11 = arith.constant 0 : index
    %8 = vector.load %arg3[%c0_10, %c0_11] : memref<16x128xf32, #tpu.memory_space<vmem>>, vector<16x128xf32>
    %c0_12 = arith.constant 0 : index
    %c0_13 = arith.constant 0 : index
    %9 = vector.load %arg4[%c0_12, %c0_13] : memref<1x128xf32, #tpu.memory_space<vmem>>, vector<1x128xf32>
    %c0_14 = arith.constant 0 : index
    %c0_15 = arith.constant 0 : index
    %10 = vector.load %arg5[%c0_14, %c0_15] : memref<16x1xf32, #tpu.memory_space<vmem>>, vector<16x1xf32>
    %11 = arith.subf %1, %5 : vector<16x128xf32>
    %12 = arith.subf %3, %7 : vector<16x128xf32>
    %13 = arith.mulf %11, %11 : vector<16x128xf32>
    %14 = arith.mulf %12, %12 : vector<16x128xf32>
    %15 = arith.addf %13, %14 : vector<16x128xf32>
    %cst = arith.constant dense<0.000000e+00> : vector<128xf32>
    %16 = vector.multi_reduction <add>, %8, %cst [0] : vector<16x128xf32> to vector<128xf32>
    %17 = vector.shape_cast %16 : vector<128xf32> to vector<1x128xf32>
    %cst_16 = arith.constant 9.99999971E-10 : f32
    %18 = vector.broadcast %cst_16 : f32 to vector<1x128xf32>
    %19 = arith.addf %17, %18 : vector<1x128xf32>
    %cst_17 = arith.constant 1.250000e-01 : f32
    %20 = vector.broadcast %cst_17 : f32 to vector<1x128xf32>
    %21 = arith.divf %20, %19 : vector<1x128xf32>
    %cst_18 = arith.constant 9.99999971E-10 : f32
    %22 = vector.broadcast %cst_18 : f32 to vector<1x128xf32>
    %23 = arith.addf %9, %22 : vector<1x128xf32>
    %24 = tpu.reciprocal %23 {approx = true} : vector<1x128xf32> -> vector<1x128xf32>
    %25 = vector.broadcast %10 : vector<16x1xf32> to vector<16x128xf32>
    %26 = arith.mulf %15, %25 : vector<16x128xf32>
    %27 = vector.broadcast %24 : vector<1x128xf32> to vector<16x128xf32>
    %28 = arith.mulf %26, %27 : vector<16x128xf32>
    %cst_19 = arith.constant 0.000000e+00 : f32
    %29 = vector.broadcast %cst_19 : f32 to vector<16x128xf32>
    %30 = arith.subf %29, %28 : vector<16x128xf32>
    %31 = math.exp %30 : vector<16x128xf32>
    %cst_20 = arith.constant 1.000000e+00 : f32
    %32 = vector.broadcast %cst_20 : f32 to vector<16x128xf32>
    %33 = arith.subf %32, %31 : vector<16x128xf32>
    %34 = arith.mulf %33, %8 : vector<16x128xf32>
    %35 = vector.broadcast %21 : vector<1x128xf32> to vector<16x128xf32>
    %36 = arith.mulf %34, %35 : vector<16x128xf32>
    %37 = vector.shape_cast %36 : vector<16x128xf32> to vector<1x16x128xf32>
    %cst_21 = arith.constant dense<0.000000e+00> : vector<1xf32>
    %38 = vector.multi_reduction <add>, %37, %cst_21 [1, 2] : vector<1x16x128xf32> to vector<1xf32>
    %39 = vector.shape_cast %38 : vector<1xf32> to vector<1x1x1xf32>
    %40 = vector.extract %39[0, 0, 0] : f32 from vector<1x1x1xf32>
    %41 = vector.broadcast %40 : f32 to vector<1x128xf32>
    %c0_22 = arith.constant 0 : index
    %c0_23 = arith.constant 0 : index
    %42 = vector.load %arg6[%c0_22, %c0_23] : memref<1x128xf32, #tpu.memory_space<vmem>>, vector<1x128xf32>
    tpu.vector_store %arg6[%c0_22, %c0_23], %41 {strides = array<i32>} : memref<1x128xf32, #tpu.memory_space<vmem>>, vector<1x128xf32>,
    return
  }
  func.func @transform_0(%arg0: i32) -> (i32, i32, i32) {
    %c0_i32 = arith.constant 0 : i32
    %c0_i32_0 = arith.constant 0 : i32
    %c0_i32_1 = arith.constant 0 : i32
    return %c0_i32, %c0_i32_0, %arg0 : i32, i32, i32
  }
  func.func @transform_1(%arg0: i32) -> (i32, i32, i32) {
    %c0_i32 = arith.constant 0 : i32
    %c0_i32_0 = arith.constant 0 : i32
    %c0_i32_1 = arith.constant 0 : i32
    return %c0_i32, %c0_i32_0, %arg0 : i32, i32, i32
  }
  func.func @transform_2(%arg0: i32) -> (i32, i32) {
    %c0_i32 = arith.constant 0 : i32
    %c0_i32_0 = arith.constant 0 : i32
    return %c0_i32, %arg0 : i32, i32
  }
  func.func @transform_3(%arg0: i32) -> (i32, i32) {
    %c0_i32 = arith.constant 0 : i32
    %c0_i32_0 = arith.constant 0 : i32
    return %c0_i32, %arg0 : i32, i32
  }
  func.func @transform_4(%arg0: i32) -> (i32, i32) {
    %c0_i32 = arith.constant 0 : i32
    %c0_i32_0 = arith.constant 0 : i32
    %c0_i32_1 = arith.constant 0 : i32
    return %c0_i32, %c0_i32_0 : i32, i32
  }
  func.func @transform_5(%arg0: i32) -> (i32, i32) {
    %c0_i32 = arith.constant 0 : i32
    %c0_i32_0 = arith.constant 0 : i32
    return %c0_i32, %arg0 : i32, i32
  }
}

</mosaic_0001>

<llo_original>
// kernel: tpu_custom_call.1
$region0: #{tpu_custom_call.1}
  #allocation0 [shape = 'u32[]', space=smem, size = 0x4, offset = 0x4, fixed_abs, tag = 'smem constant byte address 0x4 - core index']
  #allocation1 [shape = 'u32[144,128]{1,0:T(1,128)}', space=vmem, size = 0x12000, scoped, tag = 'internal scratch']
  %s0 = inlined_call_operand.hbm [shape: f32[2,16,128], index: 0, kind: input, shape index: {}]
  %s1 = inlined_call_operand.hbm [shape: f32[2,16,128], index: 1, kind: input, shape index: {}]
  %s2 = inlined_call_operand.vmem [shape: f32[16,128], index: 2, kind: input, shape index: {}]
  %s3 = inlined_call_operand.vmem [shape: f32[1,128], index: 3, kind: input, shape index: {}]
  %s4 = inlined_call_operand.vmem [shape: f32[16,1], index: 4, kind: input, shape index: {}]
  %s5 = inlined_call_operand.hbm [shape: f32[1,128], index: 5, kind: output, shape index: {}]
  %s6 = sld [smem:[#allocation0]]
  $region38: #{tpu_custom_call.1} parent=0
    _
  %s8 = ssub.s32 1, %s6
  %s9 = scalar_select 0, %s8, %s6
  $region1: #{tpu_custom_call.1} parent=0
    #allocation2 [shape = 'u8[16384]{0}', space=vmem, size = 0x4000, scoped, tag = 'input window, operand 0, single buffered']
    #allocation3 [shape = 's32[1]{0}', space=sflag, size = 0x4, scoped, tag = 'scoped memory for tpu_custom_call.1']
    #allocation4 [shape = 's32[1]{0}', space=sflag, size = 0x4, scoped, tag = 'scoped memory for tpu_custom_call.1']
    #allocation5 [shape = 'u8[16384]{0}', space=vmem, size = 0x4000, scoped, tag = 'input window, operand 1, single buffered']
    #allocation6 [shape = 's32[1]{0}', space=sflag, size = 0x4, scoped, tag = 'scoped memory for tpu_custom_call.1']
    #allocation7 [shape = 'u8[512]{0}', space=vmem, size = 0x400, scoped, tag = 'output window, operand 0, single buffered']
    %10 = vsyncpa [#allocation3], 0
    %11 = vsyncpa [#allocation6], 0
    %12 = vsyncpa [#allocation4], 0
    // Predicated region
    $region2: #{tpu_custom_call.1} parent=1 // pred_check
      _
    $region3: #{tpu_custom_call.1} parent=1 // pred_check_branch
      %14 = sbr.rel (0) target = $region5
    $region4: #{tpu_custom_call.1} parent=1 // pred_region
      %s16 = ssub.s32 512, 512
      %17 = vsyncadd [#allocation3], %s16
      %s18 = sshll.u32 [#allocation2], 4
      %s19 = int_to_ptr.vmem [resolvable:$true] %s18
      %24 = dma.hbm_to_vmem [thread:$0]  %s0, 512, %s19, [#allocation3], 128, 128, 8
    $region5: #{tpu_custom_call.1} parent=1 // pred_fallthru
      _
    // Predicated region
    $region6: #{tpu_custom_call.1} parent=1 // pred_check
      _
    $region7: #{tpu_custom_call.1} parent=1 // pred_check_branch
      %26 = sbr.rel (0) target = $region9
    $region8: #{tpu_custom_call.1} parent=1 // pred_region
      %s28 = ssub.s32 512, 512
      %29 = vsyncadd [#allocation6], %s28
      %s30 = sshll.u32 [#allocation5], 4
      %s31 = int_to_ptr.vmem [resolvable:$true] %s30
      %36 = dma.hbm_to_vmem [thread:$0]  %s1, 512, %s31, [#allocation6], 128, 128, 8
    $region9: #{tpu_custom_call.1} parent=1 // pred_fallthru
      _
    // Predicated region
    $region10: #{tpu_custom_call.1} parent=1 // pred_check
      _
    $region11: #{tpu_custom_call.1} parent=1 // pred_check_branch
      %38 = sbr.rel (0) target = $region13
    $region12: #{tpu_custom_call.1} parent=1 // pred_region
      _
    $region13: #{tpu_custom_call.1} parent=1 // pred_fallthru
      _
    // Predicated region
    $region14: #{tpu_custom_call.1} parent=1 // pred_check
      _
    $region15: #{tpu_custom_call.1} parent=1 // pred_check_branch
      %40 = sbr.rel (0) target = $region17
    $region16: #{tpu_custom_call.1} parent=1 // pred_region
      _
    $region17: #{tpu_custom_call.1} parent=1 // pred_fallthru
      _
    // Predicated region
    $region18: #{tpu_custom_call.1} parent=1 // pred_check
      _
    $region19: #{tpu_custom_call.1} parent=1 // pred_check_branch
      %42 = sbr.rel (0) target = $region21
    $region20: #{tpu_custom_call.1} parent=1 // pred_region
      _
    $region21: #{tpu_custom_call.1} parent=1 // pred_fallthru
      _
    // Predicated region
    $region22: #{tpu_custom_call.1} parent=1 // pred_check
      _
    $region23: #{tpu_custom_call.1} parent=1 // pred_check_branch
      %44 = sbr.rel (0) target = $region25
    $region24: #{tpu_custom_call.1} parent=1 // pred_region
      %45 = dma.done [#allocation3], 512
    $region25: #{tpu_custom_call.1} parent=1 // pred_fallthru
      _
    // Predicated region
    $region26: #{tpu_custom_call.1} parent=1 // pred_check
      _
    $region27: #{tpu_custom_call.1} parent=1 // pred_check_branch
      %47 = sbr.rel (0) target = $region29
    $region28: #{tpu_custom_call.1} parent=1 // pred_region
      %48 = dma.done [#allocation6], 512
    $region29: #{tpu_custom_call.1} parent=1 // pred_fallthru
      _
    %v49 = vld [vmem:[#allocation2] sm:$0xff]
    %v50 = vld [vmem:[#allocation2 + $0x8] sm:$0xff]
    %s51 = scalar_lea.vmem [#allocation2], 16
    %v52 = vld [vmem:[%s51] sm:$0xff]
    %v53 = vld [vmem:[%s51 + $0x8] sm:$0xff]
    %v54 = vld [vmem:[#allocation5] sm:$0xff]
    %v55 = vld [vmem:[#allocation5 + $0x8] sm:$0xff]
    %s56 = scalar_lea.vmem [#allocation5], 16
    %v57 = vld [vmem:[%s56] sm:$0xff]
    %v58 = vld [vmem:[%s56 + $0x8] sm:$0xff]
    %v59 = vld [vmem:[%s2] sm:$0xff]
    %v60 = vld [vmem:[%s2 + $0x8] sm:$0xff]
    %v61 = vld [vmem:[%s3] sm:$0x1]
    %v62 = vld [vmem:[%s4] sm:$0xff]
    %v63 = vld [vmem:[%s4 + $0x8] sm:$0xff]
    %v64 = vsub.f32 %v49, %v54
    %v65 = vsub.f32 %v50, %v55
    %v66 = vsub.f32 %v52, %v57
    %v67 = vsub.f32 %v53, %v58
    %v68 = vmul.f32 %v64, %v64
    %v69 = vmul.f32 %v65, %v65
    %v70 = vmul.f32 %v66, %v66
    %v71 = vmul.f32 %v67, %v67
    %v72 = vadd.f32 %v68, %v70
    %v73 = vadd.f32 %v69, %v71
    %v74 = vadd.f32 %v59, %v60
    %v75 = vrot.slane %v74, 4
    %v76 = vadd.f32 %v74, %v75
    %v77 = vrot.slane %v76, 2
    %v78 = vadd.f32 %v76, %v77
    %v79 = vrot.slane %v78, 1
    %v80 = vadd.f32 %v78, %v79
    %v81 = vadd.f32 %v80, 1e-09
    %v82 = vrcp.pop %v81
    %v83 = vmul.f32 0.125, %v82
    %v84 = vadd.f32 %v61, 1e-09
    %v85 = vrcp.pop %v84
    %87 = vset.pattern.permute.xlu0 0
    %88 = vperm.xlu0 %87, %v62
    %v89 = vpop.permute.xlu0 %88
    %92 = vset.pattern.permute.xlu0 0
    %93 = vperm.xlu0 %92, %v63
    %v94 = vpop.permute.xlu0 %93
    %v96 = vmul.f32 %v72, %v89
    %v97 = vmul.f32 %v73, %v94
    %v99 = vlaneseq
    %v100 = vshrl.u32 %v99, 7
    %v101 = vsub.s32 0, %v100
    %v102 = vrot.slane %v85, %v101
    %v104 = vmul.f32 %v96, %v102
    %v105 = vmul.f32 %v97, %v102
    %v106 = vsub.f32 0.0, %v104
    %v107 = vsub.f32 0.0, %v105
    %v108 = vmul.f32 %v106, 1.442695
    %v109 = vpow.pop %v108
    %v110 = vmul.f32 %v107, 1.442695
    %v111 = vpow.pop %v110
    %v112 = vsub.f32 1.0, %v109
    %v113 = vsub.f32 1.0, %v111
    %v114 = vmul.f32 %v112, %v59
    %v115 = vmul.f32 %v113, %v60
    %v116 = vmul.f32 %v114, %v83
    %v117 = vmul.f32 %v115, %v83
    %v118 = vadd.f32 %v116, %v117
    %119 = vadd.xlane.f32.xlu0 %v118
    %v120 = vpop.xlane.xlu0 %119
    %v121 = vrot.slane %v120, 4
    %v122 = vadd.f32 %v120, %v121
    %v123 = vrot.slane %v122, 2
    %v124 = vadd.f32 %v122, %v123
    %v125 = vrot.slane %v124, 1
    %v126 = vadd.f32 %v124, %v125
    %s127 = vtos %v126
    %v128 = vstv %s127
    %129 = vst [vmem:[#allocation7] sm:$0x1] %v128
    // Predicated region
    $region30: #{tpu_custom_call.1} parent=1 // pred_check
      _
    $region31: #{tpu_custom_call.1} parent=1 // pred_check_branch
      %131 = sbr.rel (0) target = $region33
    $region32: #{tpu_custom_call.1} parent=1 // pred_region
      %s133 = ssub.s32 16, 16
      %134 = vsyncadd [#allocation4], %s133
      %s136 = sshll.u32 [#allocation7], 4
      %s137 = int_to_ptr.vmem [resolvable:$true] %s136
      %139 = dma.vmem_to_hbm [thread:$0]  %s137, 16, %s5, [#allocation4]
    $region33: #{tpu_custom_call.1} parent=1 // pred_fallthru
      _
    // Predicated region
    $region34: #{tpu_custom_call.1} parent=1 // pred_check
      _
    $region35: #{tpu_custom_call.1} parent=1 // pred_check_branch
      %141 = sbr.rel (0) target = $region37
    $region36: #{tpu_custom_call.1} parent=1 // pred_region
      %142 = dma.done [#allocation4], 16
    $region37: #{tpu_custom_call.1} parent=1 // pred_fallthru
      _
    %143 = vsyncpa [#allocation3], 1
    %144 = vsyncpa [#allocation6], 1
    %145 = vsyncpa [#allocation4], 1

</llo_original>
